<compile_context>
chip_gen: v7x
topology: tpu7x:2x2x1
jax: 0.10.0
libtpu: 0.0.40
codegen_flags: <defaults>
</compile_context>

<pallas_src>
import jax
import jax.numpy as jnp
from jax import lax
from jax.experimental import pallas as pl
from jax.experimental.pallas import tpu as pltpu

# Small problem sizes consistent with ResB(in_c=4, out_c=8) on 16x16 images.
N = 2
IN_C = 4
OUT_C = 8
H = 16
W = 16
HW = H * W              # 256
L = N * HW              # 512 lanes -> 4 full vregs per channel row
NEG_SLOPE = 0.01        # nn.LeakyReLU() default
ONES_PAD = 8            # sublane-aligned ones block: folds b2 into the tap matmul


def _leaky(v):
    # Exact LeakyReLU for 0 < slope < 1.
    return jnp.maximum(v, NEG_SLOPE * v)


def _grid_steps():
    """2-way batch-parallel grid on v7x (2 TCs/chip); single step elsewhere."""
    try:
        kind = jax.devices()[0].device_kind.lower()
    except Exception:
        return 1
    return N if ("v7" in kind or "7x" in kind) else 1


def _tap_masks(lanes, h, w):
    """(8, lanes) f32 masks, one per non-center 3x3 tap, tap-major order.

    Tap order (oh, ow): (-1,-1) (-1,0) (-1,1) (0,-1) (0,1) (1,-1) (1,0) (1,1).
    Each mask zeros lanes whose shifted source lies outside the image (this is
    also what makes the pltpu.roll wraparound across rows / images harmless).
    """
    lane = jnp.arange(lanes)
    hh = (lane // w) % h
    ww = lane % w
    h_lo = (hh >= 1).astype(jnp.float32)
    h_hi = (hh <= h - 2).astype(jnp.float32)
    w_lo = (ww >= 1).astype(jnp.float32)
    w_hi = (ww <= w - 2).astype(jnp.float32)
    return jnp.stack([h_lo * w_lo, h_lo, h_lo * w_hi,
                      w_lo,               w_hi,
                      h_hi * w_lo, h_hi, h_hi * w_hi], axis=0)


def resb_pallas(x, w1, b1, w3, b2, w5, b3, wsk, bsk, grid_steps=None):
    n, c_in, h, w = x.shape
    c_out = w1.shape[0]
    l = n * h * w
    if grid_steps is None:
        grid_steps = _grid_steps()
    if n % grid_steps != 0:
        grid_steps = 1
    lanes = l // grid_steps         # lanes per grid step: whole images, multiple of 128

    # ---- wrapper-side layout plumbing (cheap, runs in XLA) -------------------
    # Activations: channel-major, lane-dense (C, N*H*W); constant-1 row folds
    # the conv1 / skip biases into the first MXU contraction.
    x2 = jnp.transpose(x, (1, 0, 2, 3)).reshape(c_in, l)
    x2 = jnp.concatenate([x2, jnp.ones((1, l), x2.dtype)], axis=0)        # (c_in+1, L)
    # conv1 and the skip conv consume the same input -> one fused weight.
    # b3 is folded into the skip bias (exact: no activation between them).
    w1s = jnp.concatenate(
        [jnp.concatenate([w1, b1[:, None]], axis=1),
         jnp.concatenate([wsk, (bsk + b3)[:, None]], axis=1)], axis=0)    # (2*c_out, c_in+1)
    # 3x3 conv weight, tap-major, plus a bias column hit by the ones block.
    w3m = jnp.transpose(w3, (0, 2, 3, 1)).reshape(c_out, 9 * c_out)
    w3e = jnp.concatenate(
        [w3m, b2.reshape(c_out, 1),
         jnp.zeros((c_out, ONES_PAD - 1), w3m.dtype)], axis=1)            # (c_out, 9*c_out+8)
    masks = _tap_masks(lanes, h, w)                                       # (8, lanes)

    def kernel(x_ref, w1s_ref, w3_ref, w5_ref, mask_ref, o_ref, stk_ref):
        # Ones block used to fold b2 into the tap matmul.  Written every step:
        # scratch persistence across steps is not guaranteed once the grid is
        # split across TensorCores (and the store is off the critical path).
        stk_ref[9 * c_out:, :] = jnp.ones((ONES_PAD, lanes), jnp.float32)

        # ---- conv1 (1x1) + skip conv (1x1): one fused MXU matmul -------------
        y = jnp.dot(w1s_ref[...], x_ref[...], preferred_element_type=jnp.float32)
        h1 = _leaky(y[:c_out, :])        # Res branch after conv1 + LeakyReLU
        skip = y[c_out:, :]              # skip branch (already includes bsk + b3)

        # ---- 3x3 conv taps: XLU roll + one precombined mask multiply each ----
        # tap_t[p] = h1[p + d] with d = oh*W + ow  ==  roll(h1, -d) at lane p;
        # out-of-image lanes (incl. roll wraparound) are zeroed by the mask.
        msk = mask_ref[...]
        mi = 0
        for oh in (-1, 0, 1):
            for ow in (-1, 0, 1):
                t = (oh + 1) * 3 + (ow + 1)
                if oh == 0 and ow == 0:
                    stk_ref[t * c_out:(t + 1) * c_out, :] = h1
                else:
                    d = oh * w + ow
                    s = pltpu.roll(h1, shift=(-d) % lanes, axis=1)
                    stk_ref[t * c_out:(t + 1) * c_out, :] = s * msk[mi:mi + 1, :]
                    mi += 1

        # ---- 3x3 conv as ONE (c_out, 80) x (80, lanes) MXU matmul (b2 folded)
        h2 = _leaky(jnp.dot(w3_ref[...], stk_ref[...],
                            preferred_element_type=jnp.float32))

        # ---- final 1x1 conv + skip add + LeakyReLU (b3 already inside skip) --
        res = jnp.dot(w5_ref[...], h2, preferred_element_type=jnp.float32)
        o_ref[...] = _leaky(res + skip).astype(o_ref.dtype)

    # Advisory cost hint so XLA can overlap neighbors with this tiny kernel.
    flops = 2 * l * (2 * c_out * (c_in + 1)
                     + c_out * (9 * c_out + ONES_PAD)
                     + c_out * c_out)
    bytes_accessed = 4 * (x2.size + w1s.size + w3e.size + w5.size
                          + masks.size * grid_steps + c_out * l)

    # TODO(synk): if L is ever scaled to production sizes, budget the
    # (9*c_out, lanes) tap scratch against v7x's 64 MiB VMEM (vs 128 MiB on
    # v5e/v6e) and set vmem_limit_bytes / tile the lane axis ~2x earlier there.
    out2 = pl.pallas_call(
        kernel,
        out_shape=jax.ShapeDtypeStruct((c_out, l), x.dtype),
        grid=(grid_steps,),
        in_specs=[
            pl.BlockSpec((c_in + 1, lanes), lambda b: (0, b)),
            pl.BlockSpec((2 * c_out, c_in + 1), lambda b: (0, 0)),
            pl.BlockSpec((c_out, 9 * c_out + ONES_PAD), lambda b: (0, 0)),
            pl.BlockSpec((c_out, c_out), lambda b: (0, 0)),
            pl.BlockSpec((8, lanes), lambda b: (0, 0)),
        ],
        out_specs=pl.BlockSpec((c_out, lanes), lambda b: (0, b)),
        scratch_shapes=[pltpu.VMEM((9 * c_out + ONES_PAD, lanes), jnp.float32)],
        compiler_params=pltpu.CompilerParams(
            dimension_semantics=("parallel",) if grid_steps > 1 else ("arbitrary",)),
        cost_estimate=pl.CostEstimate(flops=flops, transcendentals=0,
                                      bytes_accessed=bytes_accessed),
    )(x2, w1s, w3e, w5, masks)

    return jnp.transpose(out2.reshape(c_out, n, h, w), (1, 0, 2, 3))


def resb_ref(x, w1, b1, w3, b2, w5, b3, wsk, bsk):
    """Pure-JAX reference matching the PyTorch ResB.forward."""
    def conv(v, wgt, bias, pad):
        y = lax.conv_general_dilated(
            v, wgt, window_strides=(1, 1),
            padding=((pad, pad), (pad, pad)),
            dimension_numbers=("NCHW", "OIHW", "NCHW"),
            precision=lax.Precision.HIGHEST)
        return y + bias[None, :, None, None]

    h1 = _leaky(conv(x, w1[:, :, None, None], b1, 0))
    h2 = _leaky(conv(h1, w3, b2, 1))
    res = conv(h2, w5[:, :, None, None], b3, 0)
    skip = conv(x, wsk[:, :, None, None], bsk, 0)
    return _leaky(res + skip)


if __name__ == "__main__":
    key = jax.random.PRNGKey(0)
    ks = jax.random.split(key, 9)

    x = jax.random.normal(ks[0], (N, IN_C, H, W), dtype=jnp.float32)
    # Deterministic synthetic parameters (Conv2d weights squeezed to 2-D for 1x1):
    w1 = jax.random.normal(ks[1], (OUT_C, IN_C), dtype=jnp.float32) * 0.2
    b1 = jax.random.normal(ks[2], (OUT_C,), dtype=jnp.float32) * 0.1
    w3 = jax.random.normal(ks[3], (OUT_C, OUT_C, 3, 3), dtype=jnp.float32) * 0.1
    b2 = jax.random.normal(ks[4], (OUT_C,), dtype=jnp.float32) * 0.1
    w5 = jax.random.normal(ks[5], (OUT_C, OUT_C), dtype=jnp.float32) * 0.2
    b3 = jax.random.normal(ks[6], (OUT_C,), dtype=jnp.float32) * 0.1
    wsk = jax.random.normal(ks[7], (OUT_C, IN_C), dtype=jnp.float32) * 0.2
    bsk = jax.random.normal(ks[8], (OUT_C,), dtype=jnp.float32) * 0.1

    out = resb_pallas(x, w1, b1, w3, b2, w5, b3, wsk, bsk)
    out = jax.block_until_ready(out)

    ref = resb_ref(x, w1, b1, w3, b2, w5, b3, wsk, bsk)
    assert out.shape == (N, OUT_C, H, W) and out.dtype == x.dtype
    # Tolerance covers MXU f32 contraction precision vs HIGHEST-precision XLA conv.
    assert jnp.allclose(out, ref, atol=5e-3, rtol=5e-3), (
        "mismatch vs reference, max abs err = "
        + str(float(jnp.max(jnp.abs(out - ref)))))

    print("KERNEL_OK")
</pallas_src>

<mosaic_0001>
module attributes {stable_mosaic.version = 11 : i64} {
  func.func @kernel(%arg0: i32, %arg1: memref<5x512xf32, #tpu.memory_space<vmem>>, %arg2: memref<16x5xf32, #tpu.memory_space<vmem>>, %arg3: memref<8x80xf32, #tpu.memory_space<vmem>>, %arg4: memref<8x8xf32, #tpu.memory_space<vmem>>, %arg5: memref<8x512xf32, #tpu.memory_space<vmem>>, %arg6: memref<8x512xf32, #tpu.memory_space<vmem>>, %arg7: memref<80x512xf32, #tpu.memory_space<vmem>>) attributes {dimension_semantics = [#tpu.dimension_semantics<arbitrary>], iteration_bounds = array<i64: 1>, scalar_prefetch = 0 : i64, scratch_operands = 1 : i64, tpu.core_type = #tpu.core_type<tc>, window_params = [{transform_indices = @transform_0, window_bounds = array<i64: 5, 512>}, {pipeline_mode = #tpu.pipeline_mode<synchronous>, transform_indices = @transform_1, window_bounds = array<i64: 16, 5>}, {pipeline_mode = #tpu.pipeline_mode<synchronous>, transform_indices = @transform_2, window_bounds = array<i64: 8, 80>}, {pipeline_mode = #tpu.pipeline_mode<synchronous>, transform_indices = @transform_3, window_bounds = array<i64: 8, 8>}, {pipeline_mode = #tpu.pipeline_mode<synchronous>, transform_indices = @transform_4, window_bounds = array<i64: 8, 512>}, {transform_indices = @transform_5, window_bounds = array<i64: 8, 512>}]} {
    %cst = arith.constant 1.000000e+00 : f32
    %0 = vector.broadcast %cst : f32 to vector<8x512xf32>
    %c72 = arith.constant 72 : index
    %c0 = arith.constant 0 : index
    %1 = vector.load %arg7[%c72, %c0] : memref<80x512xf32, #tpu.memory_space<vmem>>, vector<8x512xf32>
    tpu.vector_store %arg7[%c72, %c0], %0 {strides = array<i32>} : memref<80x512xf32, #tpu.memory_space<vmem>>, vector<8x512xf32>,
    %c0_0 = arith.constant 0 : index
    %c0_1 = arith.constant 0 : index
    %2 = vector.load %arg2[%c0_0, %c0_1] : memref<16x5xf32, #tpu.memory_space<vmem>>, vector<16x5xf32>
    %c0_2 = arith.constant 0 : index
    %c0_3 = arith.constant 0 : index
    %3 = vector.load %arg1[%c0_2, %c0_3] : memref<5x512xf32, #tpu.memory_space<vmem>>, vector<5x512xf32>
    %cst_4 = arith.constant dense<0.000000e+00> : vector<16x512xf32>
    %4 = tpu.matmul %2, %3, %cst_4 {dimension_numbers = #tpu.dot_dimension_numbers<[1], [0], [0], [1], [0, 0, 1, 1], [], []>} : vector<16x5xf32>, vector<5x512xf32>, vector<16x512xf32> -> vector<16x512xf32>
    %5 = vector.extract_strided_slice %4 {offsets = [0, 0], sizes = [8, 512], strides = [1, 1]} : vector<16x512xf32> to vector<8x512xf32>
    %cst_5 = arith.constant 0.00999999977 : f32
    %6 = vector.broadcast %cst_5 : f32 to vector<8x512xf32>
    %7 = arith.mulf %6, %5 : vector<8x512xf32>
    %8 = arith.maximumf %5, %7 : vector<8x512xf32>
    %9 = vector.extract_strided_slice %4 {offsets = [8, 0], sizes = [8, 512], strides = [1, 1]} : vector<16x512xf32> to vector<8x512xf32>
    %c0_6 = arith.constant 0 : index
    %c0_7 = arith.constant 0 : index
    %10 = vector.load %arg5[%c0_6, %c0_7] : memref<8x512xf32, #tpu.memory_space<vmem>>, vector<8x512xf32>
    %c17_i32 = arith.constant 17 : i32
    %11 = tpu.dynamic_rotate %8 by %c17_i32 dim 1 : vector<8x512xf32>, i32 -> vector<8x512xf32>
    %12 = vector.extract_strided_slice %10 {offsets = [0, 0], sizes = [1, 512], strides = [1, 1]} : vector<8x512xf32> to vector<1x512xf32>
    %13 = vector.broadcast %12 : vector<1x512xf32> to vector<8x512xf32>
    %14 = arith.mulf %11, %13 : vector<8x512xf32>
    %c0_8 = arith.constant 0 : index
    %c0_9 = arith.constant 0 : index
    %15 = vector.load %arg7[%c0_8, %c0_9] : memref<80x512xf32, #tpu.memory_space<vmem>>, vector<8x512xf32>
    tpu.vector_store %arg7[%c0_8, %c0_9], %14 {strides = array<i32>} : memref<80x512xf32, #tpu.memory_space<vmem>>, vector<8x512xf32>,
    %c16_i32 = arith.constant 16 : i32
    %16 = tpu.dynamic_rotate %8 by %c16_i32 dim 1 : vector<8x512xf32>, i32 -> vector<8x512xf32>
    %17 = vector.extract_strided_slice %10 {offsets = [1, 0], sizes = [1, 512], strides = [1, 1]} : vector<8x512xf32> to vector<1x512xf32>
    %18 = vector.broadcast %17 : vector<1x512xf32> to vector<8x512xf32>
    %19 = arith.mulf %16, %18 : vector<8x512xf32>
    %c8 = arith.constant 8 : index
    %c0_10 = arith.constant 0 : index
    %20 = vector.load %arg7[%c8, %c0_10] : memref<80x512xf32, #tpu.memory_space<vmem>>, vector<8x512xf32>
    tpu.vector_store %arg7[%c8, %c0_10], %19 {strides = array<i32>} : memref<80x512xf32, #tpu.memory_space<vmem>>, vector<8x512xf32>,
    %c15_i32 = arith.constant 15 : i32
    %21 = tpu.dynamic_rotate %8 by %c15_i32 dim 1 : vector<8x512xf32>, i32 -> vector<8x512xf32>
    %22 = vector.extract_strided_slice %10 {offsets = [2, 0], sizes = [1, 512], strides = [1, 1]} : vector<8x512xf32> to vector<1x512xf32>
    %23 = vector.broadcast %22 : vector<1x512xf32> to vector<8x512xf32>
    %24 = arith.mulf %21, %23 : vector<8x512xf32>
    %c16 = arith.constant 16 : index
    %c0_11 = arith.constant 0 : index
    %25 = vector.load %arg7[%c16, %c0_11] : memref<80x512xf32, #tpu.memory_space<vmem>>, vector<8x512xf32>
    tpu.vector_store %arg7[%c16, %c0_11], %24 {strides = array<i32>} : memref<80x512xf32, #tpu.memory_space<vmem>>, vector<8x512xf32>,
    %c1_i32 = arith.constant 1 : i32
    %26 = tpu.dynamic_rotate %8 by %c1_i32 dim 1 : vector<8x512xf32>, i32 -> vector<8x512xf32>
    %27 = vector.extract_strided_slice %10 {offsets = [3, 0], sizes = [1, 512], strides = [1, 1]} : vector<8x512xf32> to vector<1x512xf32>
    %28 = vector.broadcast %27 : vector<1x512xf32> to vector<8x512xf32>
    %29 = arith.mulf %26, %28 : vector<8x512xf32>
    %c24 = arith.constant 24 : index
    %c0_12 = arith.constant 0 : index
    %30 = vector.load %arg7[%c24, %c0_12] : memref<80x512xf32, #tpu.memory_space<vmem>>, vector<8x512xf32>
    tpu.vector_store %arg7[%c24, %c0_12], %29 {strides = array<i32>} : memref<80x512xf32, #tpu.memory_space<vmem>>, vector<8x512xf32>,
    %c32 = arith.constant 32 : index
    %c0_13 = arith.constant 0 : index
    %31 = vector.load %arg7[%c32, %c0_13] : memref<80x512xf32, #tpu.memory_space<vmem>>, vector<8x512xf32>
    tpu.vector_store %arg7[%c32, %c0_13], %8 {strides = array<i32>} : memref<80x512xf32, #tpu.memory_space<vmem>>, vector<8x512xf32>,
    %c511_i32 = arith.constant 511 : i32
    %32 = tpu.dynamic_rotate %8 by %c511_i32 dim 1 : vector<8x512xf32>, i32 -> vector<8x512xf32>
    %33 = vector.extract_strided_slice %10 {offsets = [4, 0], sizes = [1, 512], strides = [1, 1]} : vector<8x512xf32> to vector<1x512xf32>
    %34 = vector.broadcast %33 : vector<1x512xf32> to vector<8x512xf32>
    %35 = arith.mulf %32, %34 : vector<8x512xf32>
    %c40 = arith.constant 40 : index
    %c0_14 = arith.constant 0 : index
    %36 = vector.load %arg7[%c40, %c0_14] : memref<80x512xf32, #tpu.memory_space<vmem>>, vector<8x512xf32>
    tpu.vector_store %arg7[%c40, %c0_14], %35 {strides = array<i32>} : memref<80x512xf32, #tpu.memory_space<vmem>>, vector<8x512xf32>,
    %c497_i32 = arith.constant 497 : i32
    %37 = tpu.dynamic_rotate %8 by %c497_i32 dim 1 : vector<8x512xf32>, i32 -> vector<8x512xf32>
    %38 = vector.extract_strided_slice %10 {offsets = [5, 0], sizes = [1, 512], strides = [1, 1]} : vector<8x512xf32> to vector<1x512xf32>
    %39 = vector.broadcast %38 : vector<1x512xf32> to vector<8x512xf32>
    %40 = arith.mulf %37, %39 : vector<8x512xf32>
    %c48 = arith.constant 48 : index
    %c0_15 = arith.constant 0 : index
    %41 = vector.load %arg7[%c48, %c0_15] : memref<80x512xf32, #tpu.memory_space<vmem>>, vector<8x512xf32>
    tpu.vector_store %arg7[%c48, %c0_15], %40 {strides = array<i32>} : memref<80x512xf32, #tpu.memory_space<vmem>>, vector<8x512xf32>,
    %c496_i32 = arith.constant 496 : i32
    %42 = tpu.dynamic_rotate %8 by %c496_i32 dim 1 : vector<8x512xf32>, i32 -> vector<8x512xf32>
    %43 = vector.extract_strided_slice %10 {offsets = [6, 0], sizes = [1, 512], strides = [1, 1]} : vector<8x512xf32> to vector<1x512xf32>
    %44 = vector.broadcast %43 : vector<1x512xf32> to vector<8x512xf32>
    %45 = arith.mulf %42, %44 : vector<8x512xf32>
    %c56 = arith.constant 56 : index
    %c0_16 = arith.constant 0 : index
    %46 = vector.load %arg7[%c56, %c0_16] : memref<80x512xf32, #tpu.memory_space<vmem>>, vector<8x512xf32>
    tpu.vector_store %arg7[%c56, %c0_16], %45 {strides = array<i32>} : memref<80x512xf32, #tpu.memory_space<vmem>>, vector<8x512xf32>,
    %c495_i32 = arith.constant 495 : i32
    %47 = tpu.dynamic_rotate %8 by %c495_i32 dim 1 : vector<8x512xf32>, i32 -> vector<8x512xf32>
    %48 = vector.extract_strided_slice %10 {offsets = [7, 0], sizes = [1, 512], strides = [1, 1]} : vector<8x512xf32> to vector<1x512xf32>
    %49 = vector.broadcast %48 : vector<1x512xf32> to vector<8x512xf32>
    %50 = arith.mulf %47, %49 : vector<8x512xf32>
    %c64 = arith.constant 64 : index
    %c0_17 = arith.constant 0 : index
    %51 = vector.load %arg7[%c64, %c0_17] : memref<80x512xf32, #tpu.memory_space<vmem>>, vector<8x512xf32>
    tpu.vector_store %arg7[%c64, %c0_17], %50 {strides = array<i32>} : memref<80x512xf32, #tpu.memory_space<vmem>>, vector<8x512xf32>,
    %c0_18 = arith.constant 0 : index
    %c0_19 = arith.constant 0 : index
    %52 = vector.load %arg3[%c0_18, %c0_19] : memref<8x80xf32, #tpu.memory_space<vmem>>, vector<8x80xf32>
    %c0_20 = arith.constant 0 : index
    %c0_21 = arith.constant 0 : index
    %53 = vector.load %arg7[%c0_20, %c0_21] : memref<80x512xf32, #tpu.memory_space<vmem>>, vector<80x512xf32>
    %cst_22 = arith.constant dense<0.000000e+00> : vector<8x512xf32>
    %54 = tpu.matmul %52, %53, %cst_22 {dimension_numbers = #tpu.dot_dimension_numbers<[1], [0], [0], [1], [0, 0, 1, 1], [], []>} : vector<8x80xf32>, vector<80x512xf32>, vector<8x512xf32> -> vector<8x512xf32>
    %cst_23 = arith.constant 0.00999999977 : f32
    %55 = vector.broadcast %cst_23 : f32 to vector<8x512xf32>
    %56 = arith.mulf %55, %54 : vector<8x512xf32>
    %57 = arith.maximumf %54, %56 : vector<8x512xf32>
    %c0_24 = arith.constant 0 : index
    %c0_25 = arith.constant 0 : index
    %58 = vector.load %arg4[%c0_24, %c0_25] : memref<8x8xf32, #tpu.memory_space<vmem>>, vector<8x8xf32>
    %cst_26 = arith.constant dense<0.000000e+00> : vector<8x512xf32>
    %59 = tpu.matmul %58, %57, %cst_26 {dimension_numbers = #tpu.dot_dimension_numbers<[1], [0], [0], [1], [0, 0, 1, 1], [], []>} : vector<8x8xf32>, vector<8x512xf32>, vector<8x512xf32> -> vector<8x512xf32>
    %60 = arith.addf %59, %9 : vector<8x512xf32>
    %cst_27 = arith.constant 0.00999999977 : f32
    %61 = vector.broadcast %cst_27 : f32 to vector<8x512xf32>
    %62 = arith.mulf %61, %60 : vector<8x512xf32>
    %63 = arith.maximumf %60, %62 : vector<8x512xf32>
    %c0_28 = arith.constant 0 : index
    %c0_29 = arith.constant 0 : index
    %64 = vector.load %arg6[%c0_28, %c0_29] : memref<8x512xf32, #tpu.memory_space<vmem>>, vector<8x512xf32>
    tpu.vector_store %arg6[%c0_28, %c0_29], %63 {strides = array<i32>} : memref<8x512xf32, #tpu.memory_space<vmem>>, vector<8x512xf32>,
    return
  }
  func.func @transform_0(%arg0: i32) -> (i32, i32) {
    %c0_i32 = arith.constant 0 : i32
    %c0_i32_0 = arith.constant 0 : i32
    return %c0_i32, %arg0 : i32, i32
  }
  func.func @transform_1(%arg0: i32) -> (i32, i32) {
    %c0_i32 = arith.constant 0 : i32
    %c0_i32_0 = arith.constant 0 : i32
    %c0_i32_1 = arith.constant 0 : i32
    return %c0_i32, %c0_i32_0 : i32, i32
  }
  func.func @transform_2(%arg0: i32) -> (i32, i32) {
    %c0_i32 = arith.constant 0 : i32
    %c0_i32_0 = arith.constant 0 : i32
    %c0_i32_1 = arith.constant 0 : i32
    return %c0_i32, %c0_i32_0 : i32, i32
  }
  func.func @transform_3(%arg0: i32) -> (i32, i32) {
    %c0_i32 = arith.constant 0 : i32
    %c0_i32_0 = arith.constant 0 : i32
    %c0_i32_1 = arith.constant 0 : i32
    return %c0_i32, %c0_i32_0 : i32, i32
  }
  func.func @transform_4(%arg0: i32) -> (i32, i32) {
    %c0_i32 = arith.constant 0 : i32
    %c0_i32_0 = arith.constant 0 : i32
    %c0_i32_1 = arith.constant 0 : i32
    return %c0_i32, %c0_i32_0 : i32, i32
  }
  func.func @transform_5(%arg0: i32) -> (i32, i32) {
    %c0_i32 = arith.constant 0 : i32
    %c0_i32_0 = arith.constant 0 : i32
    return %c0_i32, %arg0 : i32, i32
  }
}

</mosaic_0001>

<llo_original>
// kernel: tpu_custom_call.1
$region0: #{tpu_custom_call.1}
  #allocation0 [shape = 'u32[]', space=smem, size = 0x4, offset = 0x4, fixed_abs, tag = 'smem constant byte address 0x4 - core index']
  #allocation1 [shape = 'u32[144,128]{1,0:T(1,128)}', space=vmem, size = 0x12000, scoped, tag = 'internal scratch']
  #allocation2 [shape = 'f32[80,512]{1,0:T(8,128)}', space=vmem, size = 0x28000, scoped, tag = 'scratch operand']
  %s0 = inlined_call_operand.hbm [shape: f32[5,512], index: 0, kind: input, shape index: {}]
  %s1 = inlined_call_operand.vmem [shape: f32[16,5], index: 1, kind: input, shape index: {}]
  %s2 = inlined_call_operand.hbm [shape: f32[8,80], index: 2, kind: input, shape index: {}]
  %s3 = inlined_call_operand.hbm [shape: f32[8,8], index: 3, kind: input, shape index: {}]
  %s4 = inlined_call_operand.vmem [shape: f32[8,512], index: 4, kind: input, shape index: {}]
  %s5 = inlined_call_operand.hbm [shape: f32[8,512], index: 5, kind: output, shape index: {}]
  %s6 = sld [smem:[#allocation0]]
  $region42: #{tpu_custom_call.1} parent=0
    _
  %s8 = ssub.s32 1, %s6
  %s9 = scalar_select 0, %s8, %s6
  $region1: #{tpu_custom_call.1} parent=0
    #allocation3 [shape = 'u8[16384]{0}', space=vmem, size = 0x4000, scoped, tag = 'input window, operand 0, single buffered']
    #allocation4 [shape = 's32[1]{0}', space=sflag, size = 0x4, scoped, tag = 'scoped memory for tpu_custom_call.1']
    #allocation5 [shape = 's32[1]{0}', space=sflag, size = 0x4, scoped, tag = 'scoped memory for tpu_custom_call.1']
    #allocation6 [shape = 'u8[4096]{0}', space=vmem, size = 0x1000, scoped, tag = 'input window, operand 2, single buffered']
    #allocation7 [shape = 's32[1]{0}', space=sflag, size = 0x4, scoped, tag = 'scoped memory for tpu_custom_call.1']
    #allocation8 [shape = 'u8[4096]{0}', space=vmem, size = 0x1000, scoped, tag = 'input window, operand 3, single buffered']
    #allocation9 [shape = 'u8[16384]{0}', space=vmem, size = 0x4000, scoped, tag = 'output window, operand 0, single buffered']
    %10 = vsyncpa [#allocation4], 0
    %11 = vsyncpa [#allocation7], 0
    %12 = vsyncpa [#allocation5], 0
    // Predicated region
    $region2: #{tpu_custom_call.1} parent=1 // pred_check
      _
    $region3: #{tpu_custom_call.1} parent=1 // pred_check_branch
      %14 = sbr.rel (0) target = $region5
    $region4: #{tpu_custom_call.1} parent=1 // pred_region
      %s16 = ssub.s32 512, 512
      %17 = vsyncadd [#allocation4], %s16
      %s19 = sshll.u32 [#allocation3], 4
      %s20 = int_to_ptr.vmem [resolvable:$true] %s19
      %22 = dma.hbm_to_vmem [thread:$0]  %s0, 512, %s20, [#allocation4]
    $region5: #{tpu_custom_call.1} parent=1 // pred_fallthru
      _
    // Predicated region
    $region6: #{tpu_custom_call.1} parent=1 // pred_check
      _
    $region7: #{tpu_custom_call.1} parent=1 // pred_check_branch
      %24 = sbr.rel (0) target = $region9
    $region8: #{tpu_custom_call.1} parent=1 // pred_region
      _
    $region9: #{tpu_custom_call.1} parent=1 // pred_fallthru
      _
    // Predicated region
    $region10: #{tpu_custom_call.1} parent=1 // pred_check
      _
    $region11: #{tpu_custom_call.1} parent=1 // pred_check_branch
      %26 = sbr.rel (0) target = $region13
    $region12: #{tpu_custom_call.1} parent=1 // pred_region
      %s28 = ssub.s32 128, 128
      %29 = vsyncadd [#allocation7], %s28
      %s31 = sshll.u32 [#allocation6], 4
      %s32 = int_to_ptr.vmem [resolvable:$true] %s31
      %34 = dma.hbm_to_vmem [thread:$0]  %s2, 128, %s32, [#allocation7]
    $region13: #{tpu_custom_call.1} parent=1 // pred_fallthru
      _
    // Predicated region
    $region14: #{tpu_custom_call.1} parent=1 // pred_check
      _
    $region15: #{tpu_custom_call.1} parent=1 // pred_check_branch
      %36 = sbr.rel (0) target = $region17
    $region16: #{tpu_custom_call.1} parent=1 // pred_region
      %s38 = ssub.s32 128, 128
      %39 = vsyncadd [#allocation7], %s38
      %s41 = sshll.u32 [#allocation8], 4
      %s42 = int_to_ptr.vmem [resolvable:$true] %s41
      %44 = dma.hbm_to_vmem [thread:$0]  %s3, 128, %s42, [#allocation7]
    $region17: #{tpu_custom_call.1} parent=1 // pred_fallthru
      _
    // Predicated region
    $region18: #{tpu_custom_call.1} parent=1 // pred_check
      _
    $region19: #{tpu_custom_call.1} parent=1 // pred_check_branch
      %46 = sbr.rel (0) target = $region21
    $region20: #{tpu_custom_call.1} parent=1 // pred_region
      _
    $region21: #{tpu_custom_call.1} parent=1 // pred_fallthru
      _
    // Predicated region
    $region22: #{tpu_custom_call.1} parent=1 // pred_check
      _
    $region23: #{tpu_custom_call.1} parent=1 // pred_check_branch
      %48 = sbr.rel (0) target = $region25
    $region24: #{tpu_custom_call.1} parent=1 // pred_region
      %49 = dma.done [#allocation4], 512
    $region25: #{tpu_custom_call.1} parent=1 // pred_fallthru
      _
    // Predicated region
    $region26: #{tpu_custom_call.1} parent=1 // pred_check
      _
    $region27: #{tpu_custom_call.1} parent=1 // pred_check_branch
      %51 = sbr.rel (0) target = $region29
    $region28: #{tpu_custom_call.1} parent=1 // pred_region
      %52 = dma.done [#allocation7], 128
    $region29: #{tpu_custom_call.1} parent=1 // pred_fallthru
      _
    // Predicated region
    $region30: #{tpu_custom_call.1} parent=1 // pred_check
      _
    $region31: #{tpu_custom_call.1} parent=1 // pred_check_branch
      %54 = sbr.rel (0) target = $region33
    $region32: #{tpu_custom_call.1} parent=1 // pred_region
      %55 = dma.done [#allocation7], 128
    $region33: #{tpu_custom_call.1} parent=1 // pred_fallthru
      _
    %56 = vst [vmem:[#allocation2 + $0x120] sm:$0xff] 1.0
    %57 = vst [vmem:[#allocation2 + $0x128] sm:$0xff] 1.0
    %58 = vst [vmem:[#allocation2 + $0x130] sm:$0xff] 1.0
    %59 = vst [vmem:[#allocation2 + $0x138] sm:$0xff] 1.0
    %v60 = vld [vmem:[%s1] sm:$0xff]
    %v61 = vld [vmem:[%s1 + $0x8] sm:$0xff]
    %v62 = vld [vmem:[#allocation3] sm:$0x1f]
    %v63 = vld [vmem:[#allocation3 + $0x8] sm:$0x1f]
    %v64 = vld [vmem:[#allocation3 + $0x10] sm:$0x1f]
    %v65 = vld [vmem:[#allocation3 + $0x18] sm:$0x1f]
    %vm66 = vcmask 39936
    %v68 = vsel %vm66, %v60, 0
    %v71 = vsel %vm66, %v61, 0
    %vm73 = vcmask 1044480
    %v75 = vsel %vm73, %v62, 0
    %v78 = vsel %vm73, %v63, 0
    %v81 = vsel %vm73, %v64, 0
    %v84 = vsel %vm73, %v65, 0
    %86 = vmatprep.subr.mxu0 %v78
    %87 = vmatpush1.msra.mxu0 %v75
    %88 = vmatprep.subr.mxu0 0.0
    %89 = vmatpush1.msra.mxu0 0.0
    %90 = vmatprep.subr.mxu0 0.0
    %91 = vmatpush1.msra.mxu0 0.0
    %92 = vmatprep.subr.mxu0 0.0
    %93 = vmatpush1.msra.mxu0 0.0
    %94 = vmatprep.subr.mxu0 0.0
    %95 = vmatpush1.msra.mxu0 0.0
    %96 = vmatprep.subr.mxu0 0.0
    %97 = vmatpush1.msra.mxu0 0.0
    %98 = vmatprep.subr.mxu0 0.0
    %99 = vmatpush1.msra.mxu0 0.0
    %100 = vmatprep.subr.mxu0 0.0
    %101 = vmatpush1.msra.mxu0 0.0
    %102 = vmatprep.subr.mxu0 0.0
    %103 = vmatpush1.msra.mxu0 0.0
    %104 = vmatprep.subr.mxu0 0.0
    %105 = vmatpush1.msra.mxu0 0.0
    %106 = vmatprep.subr.mxu0 0.0
    %107 = vmatpush1.msra.mxu0 0.0
    %108 = vmatprep.subr.mxu0 0.0
    %109 = vmatpush1.msra.mxu0 0.0
    %110 = vmatprep.subr.mxu0 0.0
    %111 = vmatpush1.msra.mxu0 0.0
    %112 = vmatprep.subr.mxu0 0.0
    %113 = vmatpush1.msra.mxu0 0.0
    %114 = vmatprep.subr.mxu0 0.0
    %115 = vmatpush1.msra.mxu0 0.0
    %116 = vmatprep.subr.mxu0 0.0
    %117 = vmatpush1.msra.mxu0 0.0
    %118 = vmatprep.subr.mxu0 0.0
    %119 = vmatpush1.msra.mxu0 0.0
    %120 = vmatprep.subr.mxu0 0.0
    %121 = vmatpush1.msra.mxu0 0.0
    %122 = vmatprep.subr.mxu0 0.0
    %123 = vmatpush1.msra.mxu0 0.0
    %124 = vmatprep.subr.mxu0 0.0
    %125 = vmatpush1.msra.mxu0 0.0
    %126 = vmatprep.subr.mxu0 0.0
    %127 = vmatpush1.msra.mxu0 0.0
    %128 = vmatprep.subr.mxu0 0.0
    %129 = vmatpush1.msra.mxu0 0.0
    %130 = vmatprep.subr.mxu0 0.0
    %131 = vmatpush1.msra.mxu0 0.0
    %132 = vmatprep.subr.mxu0 0.0
    %133 = vmatpush1.msra.mxu0 0.0
    %134 = vmatprep.subr.mxu0 0.0
    %135 = vmatpush1.msra.mxu0 0.0
    %136 = vmatprep.subr.mxu0 0.0
    %137 = vmatpush1.msra.mxu0 0.0
    %138 = vmatprep.subr.mxu0 0.0
    %139 = vmatpush1.msra.mxu0 0.0
    %140 = vmatprep.subr.mxu0 0.0
    %141 = vmatpush1.msra.mxu0 0.0
    %142 = vmatprep.subr.mxu0 0.0
    %143 = vmatpush1.msra.mxu0 0.0
    %144 = vmatprep.subr.mxu0 0.0
    %145 = vmatpush1.msra.mxu0 0.0
    %146 = vmatprep.subr.mxu0 0.0
    %147 = vmatpush1.msra.mxu0 0.0
    %148 = vmatprep.subr.mxu0 0.0
    %149 = vmatpush1.msra.mxu0 0.0
    %150 = vmatprep.mubr.f32.mxu0 0.0
    %151 = vmatmul.mubr.f32.gmra.mrb[0].mxu0 %v68
    %v152 = vpop.f32.mrb[0].mxu0
    %v153 = vadd.f32 0.0, %v152
    %v154 = vpop.f32.mrb[0].mxu0
    %v155 = vadd.f32 0.0, %v154
    %156 = vmatprep.mubr.f32.mxu0 0.0
    %157 = vmatmul.mubr.f32.gmra.mrb[0].mxu0 %v71
    %v158 = vpop.f32.mrb[0].mxu0
    %v159 = vadd.f32 0.0, %v158
    %v160 = vpop.f32.mrb[0].mxu0
    %v161 = vadd.f32 0.0, %v160
    %162 = vdwg.mxu0
    %163 = vmatprep.subr.mxu0 %v84
    %164 = vmatpush1.msra.mxu0 %v81
    %165 = vmatprep.subr.mxu0 0.0
    %166 = vmatpush1.msra.mxu0 0.0
    %167 = vmatprep.subr.mxu0 0.0
    %168 = vmatpush1.msra.mxu0 0.0
    %169 = vmatprep.subr.mxu0 0.0
    %170 = vmatpush1.msra.mxu0 0.0
    %171 = vmatprep.subr.mxu0 0.0
    %172 = vmatpush1.msra.mxu0 0.0
    %173 = vmatprep.subr.mxu0 0.0
    %174 = vmatpush1.msra.mxu0 0.0
    %175 = vmatprep.subr.mxu0 0.0
    %176 = vmatpush1.msra.mxu0 0.0
    %177 = vmatprep.subr.mxu0 0.0
    %178 = vmatpush1.msra.mxu0 0.0
    %179 = vmatprep.subr.mxu0 0.0
    %180 = vmatpush1.msra.mxu0 0.0
    %181 = vmatprep.subr.mxu0 0.0
    %182 = vmatpush1.msra.mxu0 0.0
    %183 = vmatprep.subr.mxu0 0.0
    %184 = vmatpush1.msra.mxu0 0.0
    %185 = vmatprep.subr.mxu0 0.0
    %186 = vmatpush1.msra.mxu0 0.0
    %187 = vmatprep.subr.mxu0 0.0
    %188 = vmatpush1.msra.mxu0 0.0
    %189 = vmatprep.subr.mxu0 0.0
    %190 = vmatpush1.msra.mxu0 0.0
    %191 = vmatprep.subr.mxu0 0.0
    %192 = vmatpush1.msra.mxu0 0.0
    %193 = vmatprep.subr.mxu0 0.0
    %194 = vmatpush1.msra.mxu0 0.0
    %195 = vmatprep.subr.mxu0 0.0
    %196 = vmatpush1.msra.mxu0 0.0
    %197 = vmatprep.subr.mxu0 0.0
    %198 = vmatpush1.msra.mxu0 0.0
    %199 = vmatprep.subr.mxu0 0.0
    %200 = vmatpush1.msra.mxu0 0.0
    %201 = vmatprep.subr.mxu0 0.0
    %202 = vmatpush1.msra.mxu0 0.0
    %203 = vmatprep.subr.mxu0 0.0
    %204 = vmatpush1.msra.mxu0 0.0
    %205 = vmatprep.subr.mxu0 0.0
    %206 = vmatpush1.msra.mxu0 0.0
    %207 = vmatprep.subr.mxu0 0.0
    %208 = vmatpush1.msra.mxu0 0.0
    %209 = vmatprep.subr.mxu0 0.0
    %210 = vmatpush1.msra.mxu0 0.0
    %211 = vmatprep.subr.mxu0 0.0
    %212 = vmatpush1.msra.mxu0 0.0
    %213 = vmatprep.subr.mxu0 0.0
    %214 = vmatpush1.msra.mxu0 0.0
    %215 = vmatprep.subr.mxu0 0.0
    %216 = vmatpush1.msra.mxu0 0.0
    %217 = vmatprep.subr.mxu0 0.0
    %218 = vmatpush1.msra.mxu0 0.0
    %219 = vmatprep.subr.mxu0 0.0
    %220 = vmatpush1.msra.mxu0 0.0
    %221 = vmatprep.subr.mxu0 0.0
    %222 = vmatpush1.msra.mxu0 0.0
    %223 = vmatprep.subr.mxu0 0.0
    %224 = vmatpush1.msra.mxu0 0.0
    %225 = vmatprep.subr.mxu0 0.0
    %226 = vmatpush1.msra.mxu0 0.0
    %227 = vmatprep.mubr.f32.mxu0 0.0
    %228 = vmatmul.mubr.f32.gmra.mrb[0].mxu0 %v68
    %v229 = vpop.f32.mrb[0].mxu0
    %v230 = vadd.f32 0.0, %v229
    %v231 = vpop.f32.mrb[0].mxu0
    %v232 = vadd.f32 0.0, %v231
    %233 = vmatprep.mubr.f32.mxu0 0.0
    %234 = vmatmul.mubr.f32.gmra.mrb[0].mxu0 %v71
    %v235 = vpop.f32.mrb[0].mxu0
    %v236 = vadd.f32 0.0, %v235
    %v237 = vpop.f32.mrb[0].mxu0
    %v238 = vadd.f32 0.0, %v237
    %239 = vdwg.mxu0
    %v240 = vmul.f32 %v153, 0.01
    %v241 = vmul.f32 %v155, 0.01
    %v242 = vmul.f32 %v230, 0.01
    %v243 = vmul.f32 %v232, 0.01
    %v244 = vmax.f32 %v153, %v240
    %v245 = vmax.f32 %v155, %v241
    %v246 = vmax.f32 %v230, %v242
    %v247 = vmax.f32 %v232, %v243
    %v248 = vld [vmem:[%s4] sm:$0xff]
    %v249 = vld [vmem:[%s4 + $0x8] sm:$0xff]
    %v250 = vld [vmem:[%s4 + $0x10] sm:$0xff]
    %v251 = vld [vmem:[%s4 + $0x18] sm:$0xff]
    %252 = vrot.lane.b32.xlu0 %v244, 17
    %v253 = vpop.permute.xlu0 %252
    %254 = vrot.lane.b32.xlu0 %v245, 17
    %v255 = vpop.permute.xlu0 %254
    %256 = vrot.lane.b32.xlu0 %v246, 17
    %v257 = vpop.permute.xlu0 %256
    %258 = vrot.lane.b32.xlu0 %v247, 17
    %v259 = vpop.permute.xlu0 %258
    %v260 = vlaneseq
    %v261 = vand.u32 %v260, 127
    %vm262 = vcmp.lt.s32.totalorder %v261, 17
    %v263 = vsel %vm262, %v257, %v259
    %v264 = vsel %vm262, %v255, %v257
    %v265 = vsel %vm262, %v253, %v255
    %v266 = vsel %vm262, %v259, %v253
    %v267 = vlaneseq
    %v268 = vshrl.u32 %v267, 7
    %v269 = vsub.s32 0, %v268
    %v270 = vrot.slane %v248, %v269
    %v271 = vlaneseq
    %v272 = vshrl.u32 %v271, 7
    %v273 = vsub.s32 0, %v272
    %v274 = vrot.slane %v249, %v273
    %v275 = vlaneseq
    %v276 = vshrl.u32 %v275, 7
    %v277 = vsub.s32 0, %v276
    %v278 = vrot.slane %v250, %v277
    %v279 = vlaneseq
    %v280 = vshrl.u32 %v279, 7
    %v281 = vsub.s32 0, %v280
    %v282 = vrot.slane %v251, %v281
    %v283 = vmul.f32 %v266, %v270
    %v284 = vmul.f32 %v265, %v274
    %v285 = vmul.f32 %v264, %v278
    %v286 = vmul.f32 %v263, %v282
    %287 = vst [vmem:[#allocation2] sm:$0xff] %v283
    %288 = vst [vmem:[#allocation2 + $0x8] sm:$0xff] %v284
    %289 = vst [vmem:[#allocation2 + $0x10] sm:$0xff] %v285
    %290 = vst [vmem:[#allocation2 + $0x18] sm:$0xff] %v286
    %291 = vrot.lane.b32.xlu0 %v244, 16
    %v292 = vpop.permute.xlu0 %291
    %293 = vrot.lane.b32.xlu0 %v245, 16
    %v294 = vpop.permute.xlu0 %293
    %295 = vrot.lane.b32.xlu0 %v246, 16
    %v296 = vpop.permute.xlu0 %295
    %297 = vrot.lane.b32.xlu0 %v247, 16
    %v298 = vpop.permute.xlu0 %297
    %vm299 = vcmp.lt.s32.totalorder %v261, 16
    %v300 = vsel %vm299, %v296, %v298
    %v301 = vsel %vm299, %v294, %v296
    %v302 = vsel %vm299, %v292, %v294
    %v303 = vsel %vm299, %v298, %v292
    %v304 = vlaneseq
    %v305 = vshrl.u32 %v304, 7
    %v306 = vsub.s32 1, %v305
    %v307 = vrot.slane %v248, %v306
    %v308 = vlaneseq
    %v309 = vshrl.u32 %v308, 7
    %v310 = vsub.s32 1, %v309
    %v311 = vrot.slane %v249, %v310
    %v312 = vlaneseq
    %v313 = vshrl.u32 %v312, 7
    %v314 = vsub.s32 1, %v313
    %v315 = vrot.slane %v250, %v314
    %v316 = vlaneseq
    %v317 = vshrl.u32 %v316, 7
    %v318 = vsub.s32 1, %v317
    %v319 = vrot.slane %v251, %v318
    %v320 = vmul.f32 %v303, %v307
    %v321 = vmul.f32 %v302, %v311
    %v322 = vmul.f32 %v301, %v315
    %v323 = vmul.f32 %v300, %v319
    %324 = vst [vmem:[#allocation2 + $0x20] sm:$0xff] %v320
    %325 = vst [vmem:[#allocation2 + $0x28] sm:$0xff] %v321
    %326 = vst [vmem:[#allocation2 + $0x30] sm:$0xff] %v322
    %327 = vst [vmem:[#allocation2 + $0x38] sm:$0xff] %v323
    %328 = vrot.lane.b32.xlu0 %v244, 15
    %v329 = vpop.permute.xlu0 %328
    %330 = vrot.lane.b32.xlu0 %v245, 15
    %v331 = vpop.permute.xlu0 %330
    %332 = vrot.lane.b32.xlu0 %v246, 15
    %v333 = vpop.permute.xlu0 %332
    %334 = vrot.lane.b32.xlu0 %v247, 15
    %v335 = vpop.permute.xlu0 %334
    %vm336 = vcmp.lt.s32.totalorder %v261, 15
    %v337 = vsel %vm336, %v333, %v335
    %v338 = vsel %vm336, %v331, %v333
    %v339 = vsel %vm336, %v329, %v331
    %v340 = vsel %vm336, %v335, %v329
    %v341 = vlaneseq
    %v342 = vshrl.u32 %v341, 7
    %v343 = vsub.s32 2, %v342
    %v344 = vrot.slane %v248, %v343
    %v345 = vlaneseq
    %v346 = vshrl.u32 %v345, 7
    %v347 = vsub.s32 2, %v346
    %v348 = vrot.slane %v249, %v347
    %v349 = vlaneseq
    %v350 = vshrl.u32 %v349, 7
    %v351 = vsub.s32 2, %v350
    %v352 = vrot.slane %v250, %v351
    %v353 = vlaneseq
    %v354 = vshrl.u32 %v353, 7
    %v355 = vsub.s32 2, %v354
    %v356 = vrot.slane %v251, %v355
    %v357 = vmul.f32 %v340, %v344
    %v358 = vmul.f32 %v339, %v348
    %v359 = vmul.f32 %v338, %v352
    %v360 = vmul.f32 %v337, %v356
    %361 = vst [vmem:[#allocation2 + $0x40] sm:$0xff] %v357
    %362 = vst [vmem:[#allocation2 + $0x48] sm:$0xff] %v358
    %363 = vst [vmem:[#allocation2 + $0x50] sm:$0xff] %v359
    %364 = vst [vmem:[#allocation2 + $0x58] sm:$0xff] %v360
    %365 = vrot.lane.b32.xlu0 %v244, 1
    %v366 = vpop.permute.xlu0 %365
    %367 = vrot.lane.b32.xlu0 %v245, 1
    %v368 = vpop.permute.xlu0 %367
    %369 = vrot.lane.b32.xlu0 %v246, 1
    %v370 = vpop.permute.xlu0 %369
    %371 = vrot.lane.b32.xlu0 %v247, 1
    %v372 = vpop.permute.xlu0 %371
    %vm373 = vcmp.lt.s32.totalorder %v261, 1
    %v374 = vsel %vm373, %v370, %v372
    %v375 = vsel %vm373, %v368, %v370
    %v376 = vsel %vm373, %v366, %v368
    %v377 = vsel %vm373, %v372, %v366
    %v378 = vlaneseq
    %v379 = vshrl.u32 %v378, 7
    %v380 = vsub.s32 3, %v379
    %v381 = vrot.slane %v248, %v380
    %v382 = vlaneseq
    %v383 = vshrl.u32 %v382, 7
    %v384 = vsub.s32 3, %v383
    %v385 = vrot.slane %v249, %v384
    %v386 = vlaneseq
    %v387 = vshrl.u32 %v386, 7
    %v388 = vsub.s32 3, %v387
    %v389 = vrot.slane %v250, %v388
    %v390 = vlaneseq
    %v391 = vshrl.u32 %v390, 7
    %v392 = vsub.s32 3, %v391
    %v393 = vrot.slane %v251, %v392
    %v394 = vmul.f32 %v377, %v381
    %v395 = vmul.f32 %v376, %v385
    %v396 = vmul.f32 %v375, %v389
    %v397 = vmul.f32 %v374, %v393
    %398 = vst [vmem:[#allocation2 + $0x60] sm:$0xff] %v394
    %399 = vst [vmem:[#allocation2 + $0x68] sm:$0xff] %v395
    %400 = vst [vmem:[#allocation2 + $0x70] sm:$0xff] %v396
    %401 = vst [vmem:[#allocation2 + $0x78] sm:$0xff] %v397
    %402 = vst [vmem:[#allocation2 + $0x80] sm:$0xff] %v244
    %403 = vst [vmem:[#allocation2 + $0x88] sm:$0xff] %v245
    %404 = vst [vmem:[#allocation2 + $0x90] sm:$0xff] %v246
    %405 = vst [vmem:[#allocation2 + $0x98] sm:$0xff] %v247
    %406 = vrot.lane.b32.xlu0 %v244, 127
    %v407 = vpop.permute.xlu0 %406
    %408 = vrot.lane.b32.xlu0 %v245, 127
    %v409 = vpop.permute.xlu0 %408
    %410 = vrot.lane.b32.xlu0 %v246, 127
    %v411 = vpop.permute.xlu0 %410
    %412 = vrot.lane.b32.xlu0 %v247, 127
    %v413 = vpop.permute.xlu0 %412
    %vm414 = vcmp.lt.s32.totalorder %v261, 127
    %v415 = vsel %vm414, %v411, %v413
    %v416 = vsel %vm414, %v409, %v411
    %v417 = vsel %vm414, %v407, %v409
    %v418 = vsel %vm414, %v413, %v407
    %v419 = vlaneseq
    %v420 = vshrl.u32 %v419, 7
    %v421 = vsub.s32 4, %v420
    %v422 = vrot.slane %v248, %v421
    %v423 = vlaneseq
    %v424 = vshrl.u32 %v423, 7
    %v425 = vsub.s32 4, %v424
    %v426 = vrot.slane %v249, %v425
    %v427 = vlaneseq
    %v428 = vshrl.u32 %v427, 7
    %v429 = vsub.s32 4, %v428
    %v430 = vrot.slane %v250, %v429
    %v431 = vlaneseq
    %v432 = vshrl.u32 %v431, 7
    %v433 = vsub.s32 4, %v432
    %v434 = vrot.slane %v251, %v433
    %v435 = vmul.f32 %v417, %v422
    %v436 = vmul.f32 %v416, %v426
    %v437 = vmul.f32 %v415, %v430
    %v438 = vmul.f32 %v418, %v434
    %439 = vst [vmem:[#allocation2 + $0xa0] sm:$0xff] %v435
    %440 = vst [vmem:[#allocation2 + $0xa8] sm:$0xff] %v436
    %441 = vst [vmem:[#allocation2 + $0xb0] sm:$0xff] %v437
    %442 = vst [vmem:[#allocation2 + $0xb8] sm:$0xff] %v438
    %443 = vrot.lane.b32.xlu0 %v244, 113
    %v444 = vpop.permute.xlu0 %443
    %445 = vrot.lane.b32.xlu0 %v245, 113
    %v446 = vpop.permute.xlu0 %445
    %447 = vrot.lane.b32.xlu0 %v246, 113
    %v448 = vpop.permute.xlu0 %447
    %449 = vrot.lane.b32.xlu0 %v247, 113
    %v450 = vpop.permute.xlu0 %449
    %vm451 = vcmp.lt.s32.totalorder %v261, 113
    %v452 = vsel %vm451, %v448, %v450
    %v453 = vsel %vm451, %v446, %v448
    %v454 = vsel %vm451, %v444, %v446
    %v455 = vsel %vm451, %v450, %v444
    %v456 = vlaneseq
    %v457 = vshrl.u32 %v456, 7
    %v458 = vsub.s32 5, %v457
    %v459 = vrot.slane %v248, %v458
    %v460 = vlaneseq
    %v461 = vshrl.u32 %v460, 7
    %v462 = vsub.s32 5, %v461
    %v463 = vrot.slane %v249, %v462
    %v464 = vlaneseq
    %v465 = vshrl.u32 %v464, 7
    %v466 = vsub.s32 5, %v465
    %v467 = vrot.slane %v250, %v466
    %v468 = vlaneseq
    %v469 = vshrl.u32 %v468, 7
    %v470 = vsub.s32 5, %v469
    %v471 = vrot.slane %v251, %v470
    %v472 = vmul.f32 %v454, %v459
    %v473 = vmul.f32 %v453, %v463
    %v474 = vmul.f32 %v452, %v467
    %v475 = vmul.f32 %v455, %v471
    %476 = vst [vmem:[#allocation2 + $0xc0] sm:$0xff] %v472
    %477 = vst [vmem:[#allocation2 + $0xc8] sm:$0xff] %v473
    %478 = vst [vmem:[#allocation2 + $0xd0] sm:$0xff] %v474
    %479 = vst [vmem:[#allocation2 + $0xd8] sm:$0xff] %v475
    %480 = vrot.lane.b32.xlu0 %v244, 112
    %v481 = vpop.permute.xlu0 %480
    %482 = vrot.lane.b32.xlu0 %v245, 112
    %v483 = vpop.permute.xlu0 %482
    %484 = vrot.lane.b32.xlu0 %v246, 112
    %v485 = vpop.permute.xlu0 %484
    %486 = vrot.lane.b32.xlu0 %v247, 112
    %v487 = vpop.permute.xlu0 %486
    %vm488 = vcmp.lt.s32.totalorder %v261, 112
    %v489 = vsel %vm488, %v485, %v487
    %v490 = vsel %vm488, %v483, %v485
    %v491 = vsel %vm488, %v481, %v483
    %v492 = vsel %vm488, %v487, %v481
    %v493 = vlaneseq
    %v494 = vshrl.u32 %v493, 7
    %v495 = vsub.s32 6, %v494
    %v496 = vrot.slane %v248, %v495
    %v497 = vlaneseq
    %v498 = vshrl.u32 %v497, 7
    %v499 = vsub.s32 6, %v498
    %v500 = vrot.slane %v249, %v499
    %v501 = vlaneseq
    %v502 = vshrl.u32 %v501, 7
    %v503 = vsub.s32 6, %v502
    %v504 = vrot.slane %v250, %v503
    %v505 = vlaneseq
    %v506 = vshrl.u32 %v505, 7
    %v507 = vsub.s32 6, %v506
    %v508 = vrot.slane %v251, %v507
    %v509 = vmul.f32 %v491, %v496
    %v510 = vmul.f32 %v490, %v500
    %v511 = vmul.f32 %v489, %v504
    %v512 = vmul.f32 %v492, %v508
    %513 = vst [vmem:[#allocation2 + $0xe0] sm:$0xff] %v509
    %514 = vst [vmem:[#allocation2 + $0xe8] sm:$0xff] %v510
    %515 = vst [vmem:[#allocation2 + $0xf0] sm:$0xff] %v511
    %516 = vst [vmem:[#allocation2 + $0xf8] sm:$0xff] %v512
    %517 = vrot.lane.b32.xlu0 %v244, 111
    %v518 = vpop.permute.xlu0 %517
    %519 = vrot.lane.b32.xlu0 %v245, 111
    %v520 = vpop.permute.xlu0 %519
    %521 = vrot.lane.b32.xlu0 %v246, 111
    %v522 = vpop.permute.xlu0 %521
    %523 = vrot.lane.b32.xlu0 %v247, 111
    %v524 = vpop.permute.xlu0 %523
    %vm525 = vcmp.lt.s32.totalorder %v261, 111
    %v526 = vsel %vm525, %v522, %v524
    %v527 = vsel %vm525, %v520, %v522
    %v528 = vsel %vm525, %v518, %v520
    %v529 = vsel %vm525, %v524, %v518
    %v530 = vlaneseq
    %v531 = vshrl.u32 %v530, 7
    %v532 = vsub.s32 7, %v531
    %v533 = vrot.slane %v248, %v532
    %v534 = vlaneseq
    %v535 = vshrl.u32 %v534, 7
    %v536 = vsub.s32 7, %v535
    %v537 = vrot.slane %v249, %v536
    %v538 = vlaneseq
    %v539 = vshrl.u32 %v538, 7
    %v540 = vsub.s32 7, %v539
    %v541 = vrot.slane %v250, %v540
    %v542 = vlaneseq
    %v543 = vshrl.u32 %v542, 7
    %v544 = vsub.s32 7, %v543
    %v545 = vrot.slane %v251, %v544
    %v546 = vmul.f32 %v528, %v533
    %v547 = vmul.f32 %v527, %v537
    %v548 = vmul.f32 %v526, %v541
    %v549 = vmul.f32 %v529, %v545
    %550 = vst [vmem:[#allocation2 + $0x100] sm:$0xff] %v546
    %551 = vst [vmem:[#allocation2 + $0x108] sm:$0xff] %v547
    %552 = vst [vmem:[#allocation2 + $0x110] sm:$0xff] %v548
    %553 = vst [vmem:[#allocation2 + $0x118] sm:$0xff] %v549
    %v554 = vld [vmem:[#allocation6] sm:$0xff]
    %v555 = vld [vmem:[#allocation2] sm:$0xff]
    %v556 = vld [vmem:[#allocation2 + $0x8] sm:$0xff]
    %v557 = vld [vmem:[#allocation2 + $0x10] sm:$0xff]
    %v558 = vld [vmem:[#allocation2 + $0x18] sm:$0xff]
    %v559 = vld [vmem:[#allocation2 + $0x20] sm:$0xff]
    %v560 = vld [vmem:[#allocation2 + $0x28] sm:$0xff]
    %v561 = vld [vmem:[#allocation2 + $0x30] sm:$0xff]
    %v562 = vld [vmem:[#allocation2 + $0x38] sm:$0xff]
    %v563 = vld [vmem:[#allocation2 + $0x40] sm:$0xff]
    %v564 = vld [vmem:[#allocation2 + $0x48] sm:$0xff]
    %v565 = vld [vmem:[#allocation2 + $0x50] sm:$0xff]
    %v566 = vld [vmem:[#allocation2 + $0x58] sm:$0xff]
    %v567 = vld [vmem:[#allocation2 + $0x60] sm:$0xff]
    %v568 = vld [vmem:[#allocation2 + $0x68] sm:$0xff]
    %v569 = vld [vmem:[#allocation2 + $0x70] sm:$0xff]
    %v570 = vld [vmem:[#allocation2 + $0x78] sm:$0xff]
    %v571 = vld [vmem:[#allocation2 + $0x80] sm:$0xff]
    %v572 = vld [vmem:[#allocation2 + $0x88] sm:$0xff]
    %v573 = vld [vmem:[#allocation2 + $0x90] sm:$0xff]
    %v574 = vld [vmem:[#allocation2 + $0x98] sm:$0xff]
    %v575 = vld [vmem:[#allocation2 + $0xa0] sm:$0xff]
    %v576 = vld [vmem:[#allocation2 + $0xa8] sm:$0xff]
    %v577 = vld [vmem:[#allocation2 + $0xb0] sm:$0xff]
    %v578 = vld [vmem:[#allocation2 + $0xb8] sm:$0xff]
    %v579 = vld [vmem:[#allocation2 + $0xc0] sm:$0xff]
    %v580 = vld [vmem:[#allocation2 + $0xc8] sm:$0xff]
    %v581 = vld [vmem:[#allocation2 + $0xd0] sm:$0xff]
    %v582 = vld [vmem:[#allocation2 + $0xd8] sm:$0xff]
    %v583 = vld [vmem:[#allocation2 + $0xe0] sm:$0xff]
    %v584 = vld [vmem:[#allocation2 + $0xe8] sm:$0xff]
    %v585 = vld [vmem:[#allocation2 + $0xf0] sm:$0xff]
    %v586 = vld [vmem:[#allocation2 + $0xf8] sm:$0xff]
    %v587 = vld [vmem:[#allocation2 + $0x100] sm:$0xff]
    %v588 = vld [vmem:[#allocation2 + $0x108] sm:$0xff]
    %v589 = vld [vmem:[#allocation2 + $0x110] sm:$0xff]
    %v590 = vld [vmem:[#allocation2 + $0x118] sm:$0xff]
    %v591 = vld [vmem:[#allocation2 + $0x120] sm:$0xff]
    %v592 = vld [vmem:[#allocation2 + $0x128] sm:$0xff]
    %v593 = vld [vmem:[#allocation2 + $0x130] sm:$0xff]
    %v594 = vld [vmem:[#allocation2 + $0x138] sm:$0xff]
    %vm595 = vcmask 654336
    %v597 = vsel %vm595, %v554, 0
    %599 = vmatprep.subr.mxu0 %v556
    %600 = vmatpush1.msra.mxu0 %v555
    %601 = vmatprep.subr.mxu0 %v560
    %602 = vmatpush1.msra.mxu0 %v559
    %603 = vmatprep.subr.mxu0 %v564
    %604 = vmatpush1.msra.mxu0 %v563
    %605 = vmatprep.subr.mxu0 %v568
    %606 = vmatpush1.msra.mxu0 %v567
    %607 = vmatprep.subr.mxu0 %v572
    %608 = vmatpush1.msra.mxu0 %v571
    %609 = vmatprep.subr.mxu0 %v576
    %610 = vmatpush1.msra.mxu0 %v575
    %611 = vmatprep.subr.mxu0 %v580
    %612 = vmatpush1.msra.mxu0 %v579
    %613 = vmatprep.subr.mxu0 %v584
    %614 = vmatpush1.msra.mxu0 %v583
    %615 = vmatprep.subr.mxu0 %v588
    %616 = vmatpush1.msra.mxu0 %v587
    %617 = vmatprep.subr.mxu0 %v592
    %618 = vmatpush1.msra.mxu0 %v591
    %619 = vmatprep.subr.mxu0 0.0
    %620 = vmatpush1.msra.mxu0 0.0
    %621 = vmatprep.subr.mxu0 0.0
    %622 = vmatpush1.msra.mxu0 0.0
    %623 = vmatprep.subr.mxu0 0.0
    %624 = vmatpush1.msra.mxu0 0.0
    %625 = vmatprep.subr.mxu0 0.0
    %626 = vmatpush1.msra.mxu0 0.0
    %627 = vmatprep.subr.mxu0 0.0
    %628 = vmatpush1.msra.mxu0 0.0
    %629 = vmatprep.subr.mxu0 0.0
    %630 = vmatpush1.msra.mxu0 0.0
    %631 = vmatprep.subr.mxu0 0.0
    %632 = vmatpush1.msra.mxu0 0.0
    %633 = vmatprep.subr.mxu0 0.0
    %634 = vmatpush1.msra.mxu0 0.0
    %635 = vmatprep.subr.mxu0 0.0
    %636 = vmatpush1.msra.mxu0 0.0
    %637 = vmatprep.subr.mxu0 0.0
    %638 = vmatpush1.msra.mxu0 0.0
    %639 = vmatprep.subr.mxu0 0.0
    %640 = vmatpush1.msra.mxu0 0.0
    %641 = vmatprep.subr.mxu0 0.0
    %642 = vmatpush1.msra.mxu0 0.0
    %643 = vmatprep.subr.mxu0 0.0
    %644 = vmatpush1.msra.mxu0 0.0
    %645 = vmatprep.subr.mxu0 0.0
    %646 = vmatpush1.msra.mxu0 0.0
    %647 = vmatprep.subr.mxu0 0.0
    %648 = vmatpush1.msra.mxu0 0.0
    %649 = vmatprep.subr.mxu0 0.0
    %650 = vmatpush1.msra.mxu0 0.0
    %651 = vmatprep.subr.mxu0 0.0
    %652 = vmatpush1.msra.mxu0 0.0
    %653 = vmatprep.subr.mxu0 0.0
    %654 = vmatpush1.msra.mxu0 0.0
    %655 = vmatprep.subr.mxu0 0.0
    %656 = vmatpush1.msra.mxu0 0.0
    %657 = vmatprep.subr.mxu0 0.0
    %658 = vmatpush1.msra.mxu0 0.0
    %659 = vmatprep.subr.mxu0 0.0
    %660 = vmatpush1.msra.mxu0 0.0
    %661 = vmatprep.subr.mxu0 0.0
    %662 = vmatpush1.msra.mxu0 0.0
    %663 = vmatprep.mubr.f32.mxu0 0.0
    %664 = vmatmul.mubr.f32.gmra.mrb[0].mxu0 %v597
    %v665 = vpop.f32.mrb[0].mxu0
    %v666 = vadd.f32 0.0, %v665
    %v667 = vpop.f32.mrb[0].mxu0
    %v668 = vadd.f32 0.0, %v667
    %669 = vdwg.mxu0
    %670 = vmatprep.subr.mxu0 %v558
    %671 = vmatpush1.msra.mxu0 %v557
    %672 = vmatprep.subr.mxu0 %v562
    %673 = vmatpush1.msra.mxu0 %v561
    %674 = vmatprep.subr.mxu0 %v566
    %675 = vmatpush1.msra.mxu0 %v565
    %676 = vmatprep.subr.mxu0 %v570
    %677 = vmatpush1.msra.mxu0 %v569
    %678 = vmatprep.subr.mxu0 %v574
    %679 = vmatpush1.msra.mxu0 %v573
    %680 = vmatprep.subr.mxu0 %v578
    %681 = vmatpush1.msra.mxu0 %v577
    %682 = vmatprep.subr.mxu0 %v582
    %683 = vmatpush1.msra.mxu0 %v581
    %684 = vmatprep.subr.mxu0 %v586
    %685 = vmatpush1.msra.mxu0 %v585
    %686 = vmatprep.subr.mxu0 %v590
    %687 = vmatpush1.msra.mxu0 %v589
    %688 = vmatprep.subr.mxu0 %v594
    %689 = vmatpush1.msra.mxu0 %v593
    %690 = vmatprep.subr.mxu0 0.0
    %691 = vmatpush1.msra.mxu0 0.0
    %692 = vmatprep.subr.mxu0 0.0
    %693 = vmatpush1.msra.mxu0 0.0
    %694 = vmatprep.subr.mxu0 0.0
    %695 = vmatpush1.msra.mxu0 0.0
    %696 = vmatprep.subr.mxu0 0.0
    %697 = vmatpush1.msra.mxu0 0.0
    %698 = vmatprep.subr.mxu0 0.0
    %699 = vmatpush1.msra.mxu0 0.0
    %700 = vmatprep.subr.mxu0 0.0
    %701 = vmatpush1.msra.mxu0 0.0
    %702 = vmatprep.subr.mxu0 0.0
    %703 = vmatpush1.msra.mxu0 0.0
    %704 = vmatprep.subr.mxu0 0.0
    %705 = vmatpush1.msra.mxu0 0.0
    %706 = vmatprep.subr.mxu0 0.0
    %707 = vmatpush1.msra.mxu0 0.0
    %708 = vmatprep.subr.mxu0 0.0
    %709 = vmatpush1.msra.mxu0 0.0
    %710 = vmatprep.subr.mxu0 0.0
    %711 = vmatpush1.msra.mxu0 0.0
    %712 = vmatprep.subr.mxu0 0.0
    %713 = vmatpush1.msra.mxu0 0.0
    %714 = vmatprep.subr.mxu0 0.0
    %715 = vmatpush1.msra.mxu0 0.0
    %716 = vmatprep.subr.mxu0 0.0
    %717 = vmatpush1.msra.mxu0 0.0
    %718 = vmatprep.subr.mxu0 0.0
    %719 = vmatpush1.msra.mxu0 0.0
    %720 = vmatprep.subr.mxu0 0.0
    %721 = vmatpush1.msra.mxu0 0.0
    %722 = vmatprep.subr.mxu0 0.0
    %723 = vmatpush1.msra.mxu0 0.0
    %724 = vmatprep.subr.mxu0 0.0
    %725 = vmatpush1.msra.mxu0 0.0
    %726 = vmatprep.subr.mxu0 0.0
    %727 = vmatpush1.msra.mxu0 0.0
    %728 = vmatprep.subr.mxu0 0.0
    %729 = vmatpush1.msra.mxu0 0.0
    %730 = vmatprep.subr.mxu0 0.0
    %731 = vmatpush1.msra.mxu0 0.0
    %732 = vmatprep.subr.mxu0 0.0
    %733 = vmatpush1.msra.mxu0 0.0
    %734 = vmatprep.mubr.f32.mxu0 0.0
    %735 = vmatmul.mubr.f32.gmra.mrb[0].mxu0 %v597
    %v736 = vpop.f32.mrb[0].mxu0
    %v737 = vadd.f32 0.0, %v736
    %v738 = vpop.f32.mrb[0].mxu0
    %v739 = vadd.f32 0.0, %v738
    %740 = vdwg.mxu0
    %v741 = vmul.f32 %v666, 0.01
    %v742 = vmul.f32 %v668, 0.01
    %v743 = vmul.f32 %v737, 0.01
    %v744 = vmul.f32 %v739, 0.01
    %v745 = vmax.f32 %v666, %v741
    %v746 = vmax.f32 %v668, %v742
    %v747 = vmax.f32 %v737, %v743
    %v748 = vmax.f32 %v739, %v744
    %v749 = vld [vmem:[#allocation8] sm:$0xff]
    %vm750 = vcmask 64512
    %v752 = vsel %vm750, %v749, 0
    %754 = vmatprep.subr.mxu0 %v746
    %755 = vmatpush1.msra.mxu0 %v745
    %756 = vmatprep.subr.mxu0 0.0
    %757 = vmatpush1.msra.mxu0 0.0
    %758 = vmatprep.subr.mxu0 0.0
    %759 = vmatpush1.msra.mxu0 0.0
    %760 = vmatprep.subr.mxu0 0.0
    %761 = vmatpush1.msra.mxu0 0.0
    %762 = vmatprep.subr.mxu0 0.0
    %763 = vmatpush1.msra.mxu0 0.0
    %764 = vmatprep.subr.mxu0 0.0
    %765 = vmatpush1.msra.mxu0 0.0
    %766 = vmatprep.subr.mxu0 0.0
    %767 = vmatpush1.msra.mxu0 0.0
    %768 = vmatprep.subr.mxu0 0.0
    %769 = vmatpush1.msra.mxu0 0.0
    %770 = vmatprep.subr.mxu0 0.0
    %771 = vmatpush1.msra.mxu0 0.0
    %772 = vmatprep.subr.mxu0 0.0
    %773 = vmatpush1.msra.mxu0 0.0
    %774 = vmatprep.subr.mxu0 0.0
    %775 = vmatpush1.msra.mxu0 0.0
    %776 = vmatprep.subr.mxu0 0.0
    %777 = vmatpush1.msra.mxu0 0.0
    %778 = vmatprep.subr.mxu0 0.0
    %779 = vmatpush1.msra.mxu0 0.0
    %780 = vmatprep.subr.mxu0 0.0
    %781 = vmatpush1.msra.mxu0 0.0
    %782 = vmatprep.subr.mxu0 0.0
    %783 = vmatpush1.msra.mxu0 0.0
    %784 = vmatprep.subr.mxu0 0.0
    %785 = vmatpush1.msra.mxu0 0.0
    %786 = vmatprep.subr.mxu0 0.0
    %787 = vmatpush1.msra.mxu0 0.0
    %788 = vmatprep.subr.mxu0 0.0
    %789 = vmatpush1.msra.mxu0 0.0
    %790 = vmatprep.subr.mxu0 0.0
    %791 = vmatpush1.msra.mxu0 0.0
    %792 = vmatprep.subr.mxu0 0.0
    %793 = vmatpush1.msra.mxu0 0.0
    %794 = vmatprep.subr.mxu0 0.0
    %795 = vmatpush1.msra.mxu0 0.0
    %796 = vmatprep.subr.mxu0 0.0
    %797 = vmatpush1.msra.mxu0 0.0
    %798 = vmatprep.subr.mxu0 0.0
    %799 = vmatpush1.msra.mxu0 0.0
    %800 = vmatprep.subr.mxu0 0.0
    %801 = vmatpush1.msra.mxu0 0.0
    %802 = vmatprep.subr.mxu0 0.0
    %803 = vmatpush1.msra.mxu0 0.0
    %804 = vmatprep.subr.mxu0 0.0
    %805 = vmatpush1.msra.mxu0 0.0
    %806 = vmatprep.subr.mxu0 0.0
    %807 = vmatpush1.msra.mxu0 0.0
    %808 = vmatprep.subr.mxu0 0.0
    %809 = vmatpush1.msra.mxu0 0.0
    %810 = vmatprep.subr.mxu0 0.0
    %811 = vmatpush1.msra.mxu0 0.0
    %812 = vmatprep.subr.mxu0 0.0
    %813 = vmatpush1.msra.mxu0 0.0
    %814 = vmatprep.subr.mxu0 0.0
    %815 = vmatpush1.msra.mxu0 0.0
    %816 = vmatprep.subr.mxu0 0.0
    %817 = vmatpush1.msra.mxu0 0.0
    %818 = vmatprep.mubr.f32.mxu0 0.0
    %819 = vmatmul.mubr.f32.gmra.mrb[0].mxu0 %v752
    %v820 = vpop.f32.mrb[0].mxu0
    %v821 = vadd.f32 %v159, %v820
    %v822 = vpop.f32.mrb[0].mxu0
    %v823 = vadd.f32 %v161, %v822
    %824 = vdwg.mxu0
    %825 = vmatprep.subr.mxu0 %v748
    %826 = vmatpush1.msra.mxu0 %v747
    %827 = vmatprep.subr.mxu0 0.0
    %828 = vmatpush1.msra.mxu0 0.0
    %829 = vmatprep.subr.mxu0 0.0
    %830 = vmatpush1.msra.mxu0 0.0
    %831 = vmatprep.subr.mxu0 0.0
    %832 = vmatpush1.msra.mxu0 0.0
    %833 = vmatprep.subr.mxu0 0.0
    %834 = vmatpush1.msra.mxu0 0.0
    %835 = vmatprep.subr.mxu0 0.0
    %836 = vmatpush1.msra.mxu0 0.0
    %837 = vmatprep.subr.mxu0 0.0
    %838 = vmatpush1.msra.mxu0 0.0
    %839 = vmatprep.subr.mxu0 0.0
    %840 = vmatpush1.msra.mxu0 0.0
    %841 = vmatprep.subr.mxu0 0.0
    %842 = vmatpush1.msra.mxu0 0.0
    %843 = vmatprep.subr.mxu0 0.0
    %844 = vmatpush1.msra.mxu0 0.0
    %845 = vmatprep.subr.mxu0 0.0
    %846 = vmatpush1.msra.mxu0 0.0
    %847 = vmatprep.subr.mxu0 0.0
    %848 = vmatpush1.msra.mxu0 0.0
    %849 = vmatprep.subr.mxu0 0.0
    %850 = vmatpush1.msra.mxu0 0.0
    %851 = vmatprep.subr.mxu0 0.0
    %852 = vmatpush1.msra.mxu0 0.0
    %853 = vmatprep.subr.mxu0 0.0
    %854 = vmatpush1.msra.mxu0 0.0
    %855 = vmatprep.subr.mxu0 0.0
    %856 = vmatpush1.msra.mxu0 0.0
    %857 = vmatprep.subr.mxu0 0.0
    %858 = vmatpush1.msra.mxu0 0.0
    %859 = vmatprep.subr.mxu0 0.0
    %860 = vmatpush1.msra.mxu0 0.0
    %861 = vmatprep.subr.mxu0 0.0
    %862 = vmatpush1.msra.mxu0 0.0
    %863 = vmatprep.subr.mxu0 0.0
    %864 = vmatpush1.msra.mxu0 0.0
    %865 = vmatprep.subr.mxu0 0.0
    %866 = vmatpush1.msra.mxu0 0.0
    %867 = vmatprep.subr.mxu0 0.0
    %868 = vmatpush1.msra.mxu0 0.0
    %869 = vmatprep.subr.mxu0 0.0
    %870 = vmatpush1.msra.mxu0 0.0
    %871 = vmatprep.subr.mxu0 0.0
    %872 = vmatpush1.msra.mxu0 0.0
    %873 = vmatprep.subr.mxu0 0.0
    %874 = vmatpush1.msra.mxu0 0.0
    %875 = vmatprep.subr.mxu0 0.0
    %876 = vmatpush1.msra.mxu0 0.0
    %877 = vmatprep.subr.mxu0 0.0
    %878 = vmatpush1.msra.mxu0 0.0
    %879 = vmatprep.subr.mxu0 0.0
    %880 = vmatpush1.msra.mxu0 0.0
    %881 = vmatprep.subr.mxu0 0.0
    %882 = vmatpush1.msra.mxu0 0.0
    %883 = vmatprep.subr.mxu0 0.0
    %884 = vmatpush1.msra.mxu0 0.0
    %885 = vmatprep.subr.mxu0 0.0
    %886 = vmatpush1.msra.mxu0 0.0
    %887 = vmatprep.subr.mxu0 0.0
    %888 = vmatpush1.msra.mxu0 0.0
    %889 = vmatprep.mubr.f32.mxu0 0.0
    %890 = vmatmul.mubr.f32.gmra.mrb[0].mxu0 %v752
    %v891 = vpop.f32.mrb[0].mxu0
    %v892 = vadd.f32 %v236, %v891
    %v893 = vpop.f32.mrb[0].mxu0
    %v894 = vadd.f32 %v238, %v893
    %895 = vdwg.mxu0
    %v896 = vmul.f32 %v821, 0.01
    %v897 = vmul.f32 %v823, 0.01
    %v898 = vmul.f32 %v892, 0.01
    %v899 = vmul.f32 %v894, 0.01
    %v900 = vmax.f32 %v821, %v896
    %v901 = vmax.f32 %v823, %v897
    %v902 = vmax.f32 %v892, %v898
    %v903 = vmax.f32 %v894, %v899
    %904 = vst [vmem:[#allocation9] sm:$0xff] %v900
    %905 = vst [vmem:[#allocation9 + $0x8] sm:$0xff] %v901
    %906 = vst [vmem:[#allocation9 + $0x10] sm:$0xff] %v902
    %907 = vst [vmem:[#allocation9 + $0x18] sm:$0xff] %v903
    // Predicated region
    $region34: #{tpu_custom_call.1} parent=1 // pred_check
      _
    $region35: #{tpu_custom_call.1} parent=1 // pred_check_branch
      %909 = sbr.rel (0) target = $region37
    $region36: #{tpu_custom_call.1} parent=1 // pred_region
      %s911 = ssub.s32 512, 512
      %912 = vsyncadd [#allocation5], %s911
      %s914 = sshll.u32 [#allocation9], 4
      %s915 = int_to_ptr.vmem [resolvable:$true] %s914
      %917 = dma.vmem_to_hbm [thread:$0]  %s915, 512, %s5, [#allocation5]
    $region37: #{tpu_custom_call.1} parent=1 // pred_fallthru
      _
    // Predicated region
    $region38: #{tpu_custom_call.1} parent=1 // pred_check
      _
    $region39: #{tpu_custom_call.1} parent=1 // pred_check_branch
      %919 = sbr.rel (0) target = $region41
    $region40: #{tpu_custom_call.1} parent=1 // pred_region
      %920 = dma.done [#allocation5], 512
    $region41: #{tpu_custom_call.1} parent=1 // pred_fallthru
      _
    %921 = vsyncpa [#allocation4], 1
    %922 = vsyncpa [#allocation7], 1
    %923 = vsyncpa [#allocation5], 1

</llo_original>
